<compile_context>
chip_gen: v5e
topology: v5e:2x2
jax: 0.10.0
libtpu: 0.0.40
codegen_flags: <defaults>
</compile_context>

<pallas_src>
import functools

import jax
import jax.numpy as jnp
from jax import lax
from jax.experimental import pallas as pl
from jax.experimental.pallas import tpu as pltpu


def _default_q_kernel(s_ref, sp_ref, w1_ref, b1_ref, w2row_ref, o_ref):
    """sigmoid(V(s') - V(s)) for one batch tile; V = Linear -> ReLU -> Linear."""
    w1 = w1_ref[...]
    b1 = b1_ref[...]

    # Two layer-1 matmuls sharing the resident w1 RHS (no concat VMEM copy).
    h = jnp.maximum(jnp.dot(s_ref[...], w1, preferred_element_type=jnp.float32) + b1, 0.0)
    hp = jnp.maximum(jnp.dot(sp_ref[...], w1, preferred_element_type=jnp.float32) + b1, 0.0)

    # Layer-2 linearity: V(s') - V(s) = (relu(h') - relu(h)) @ w2  (b2 cancels exactly).
    h_diff = hp - h                                                     # (tb, H)

    # Lane-dense epilogue: (1, H) contracted with (tb, H) on H -> (1, tb) row.
    v_row = lax.dot_general(
        w2row_ref[...], h_diff,
        dimension_numbers=(((1,), (1,)), ((), ())),
        preferred_element_type=jnp.float32)                             # (1, tb)

    # sigmoid(x) = 1/(1+exp(-x)); exp(-x)->inf for very negative x => 1/(1+inf)->0 (benign,
    # do NOT "fix" into an expression that produces NaN).  exp + approx reciprocal -> EUP.
    o_ref[...] = pl.reciprocal(1.0 + jnp.exp(-v_row), approx=True).astype(o_ref.dtype)


def _round_up(x, m):
    return ((x + m - 1) // m) * m


def _cdiv(a, b):
    return -(-a // b)


@functools.partial(jax.jit, static_argnames=("block_b",))
def default_q(s, s_prime, w1, b1, w2, b2=None, *, block_b=1024):
    """DefaultQ forward: sigmoid(V(s_prime) - V(s)).

    s, s_prime : (B, D)
    w1 : (D, H), b1 : (1, H), w2 : (H, 1), b2 : (1, 1)
    b2 cancels in V(s') - V(s) and is accepted only for API compatibility (unused).
    Returns (B, 1) float32.
    """
    B, D = s.shape
    H = w1.shape[1]
    assert s_prime.shape == (B, D)
    assert w1.shape == (D, H) and b1.shape == (1, H) and w2.shape == (H, 1)

    itemsize = jnp.dtype(s.dtype).itemsize
    # Keep 2 inputs x 2 pipeline buffers x (tile_b, D) well under VMEM (v7x: 64 MiB phys,
    # 32 MiB scoped default); target ~24 MiB of streamed-input footprint.
    vmem_budget = 24 * 1024 * 1024
    max_tile = max(128, (vmem_budget // (4 * D * itemsize)) // 128 * 128)
    tile_cap = max(128, (min(block_b, max_tile) // 128) * 128)

    B_align = _round_up(B, 8)
    if B_align <= tile_cap:
        if B_align >= 512:
            # Moderate batch that fits a single tile: split in two so both v7x
            # TensorCores get a grid step via dimension_semantics=("parallel",).
            tile_b = min(tile_cap, _round_up(_cdiv(B_align, 2), 128))
        else:
            tile_b = B_align            # tiny batch: one ragged tile, no padding copy
    else:
        tile_b = tile_cap               # streamed; multiple of 128 (lane-dense output)
    num_tiles = _cdiv(B, tile_b)

    # Column vector -> lane-major (1, H) row for the layer-2 contraction.
    w2_row = w2.reshape(1, H)

    # Advisory cost hint for XLA's scheduler around the custom call.
    cost = pl.CostEstimate(
        flops=4 * B * D * H + 2 * B * H,
        transcendentals=2 * B,
        bytes_accessed=2 * B * D * itemsize + B * 4 + (D * H + 2 * H) * 4,
    )

    # Lane-dense output slab: one (1, tile_b) row per grid step (unmasked vst), reshaped
    # back to (B, 1) in the wrapper.  The ragged final block (when tile_b does not divide
    # B) is handled by Pallas: padding rows are row-independent garbage whose output
    # columns are sliced away below.
    out = pl.pallas_call(
        _default_q_kernel,
        out_shape=jax.ShapeDtypeStruct((1, num_tiles * tile_b), jnp.float32),
        grid_spec=pltpu.PrefetchScalarGridSpec(
            num_scalar_prefetch=0,
            grid=(num_tiles,),
            in_specs=[
                pl.BlockSpec((tile_b, D), lambda i: (i, 0)),  # s  (streamed)
                pl.BlockSpec((tile_b, D), lambda i: (i, 0)),  # s' (streamed)
                pl.BlockSpec((D, H), lambda i: (0, 0)),       # w1 (resident)
                pl.BlockSpec((1, H), lambda i: (0, 0)),       # b1 (resident)
                pl.BlockSpec((1, H), lambda i: (0, 0)),       # w2 row (resident)
            ],
            out_specs=pl.BlockSpec((1, tile_b), lambda i: (0, i)),
        ),
        compiler_params=pltpu.CompilerParams(
            dimension_semantics=("parallel",),  # shard batch tiles across v7x's 2 TCs
        ),
        cost_estimate=cost,
    )(s, s_prime, w1, b1, w2_row)

    return out[0, :B].reshape(B, 1)


if __name__ == "__main__":
    key = jax.random.PRNGKey(0)
    B, D, H = 8, 32, 128  # batch, state feature dim, hidden dim of the V model

    k_s, k_sp, k_w1, k_b1, k_w2, k_b2 = jax.random.split(key, 6)
    s = jax.random.normal(k_s, (B, D), dtype=jnp.float32)
    s_prime = jax.random.normal(k_sp, (B, D), dtype=jnp.float32)

    # Deterministic synthetic V-model parameters (PyTorch-Linear-like fan-in scaling).
    w1 = jax.random.normal(k_w1, (D, H), dtype=jnp.float32) / jnp.sqrt(D)
    b1 = jax.random.normal(k_b1, (1, H), dtype=jnp.float32) * 0.01
    w2 = jax.random.normal(k_w2, (H, 1), dtype=jnp.float32) / jnp.sqrt(H)
    b2 = jax.random.normal(k_b2, (1, 1), dtype=jnp.float32) * 0.01

    out = jax.block_until_ready(default_q(s, s_prime, w1, b1, w2, b2))

    def reference(s, s_prime):
        def v(x):
            return jnp.maximum(x @ w1 + b1, 0.0) @ w2 + b2
        return jax.nn.sigmoid(v(s_prime) - v(s))

    ref = reference(s, s_prime)
    assert out.shape == (B, 1)
    # Tolerance covers the EUP approximate reciprocal used in the sigmoid denominator.
    assert jnp.allclose(out, ref, atol=1e-3, rtol=1e-3), float(jnp.max(jnp.abs(out - ref)))

    print("KERNEL_OK")
</pallas_src>

<mosaic_0001>
module attributes {stable_mosaic.version = 11 : i64} {
  func.func @_default_q_kernel(%arg0: i32, %arg1: memref<8x32xf32, #tpu.memory_space<vmem>>, %arg2: memref<8x32xf32, #tpu.memory_space<vmem>>, %arg3: memref<32x128xf32, #tpu.memory_space<vmem>>, %arg4: memref<1x128xf32, #tpu.memory_space<vmem>>, %arg5: memref<1x128xf32, #tpu.memory_space<vmem>>, %arg6: memref<1x8xf32, #tpu.memory_space<vmem>>) attributes {dimension_semantics = [#tpu.dimension_semantics<parallel>], iteration_bounds = array<i64: 1>, scalar_prefetch = 0 : i64, scratch_operands = 0 : i64, tpu.core_type = #tpu.core_type<tc>, window_params = [{transform_indices = @transform_0, window_bounds = array<i64: 8, 32>}, {transform_indices = @transform_1, window_bounds = array<i64: 8, 32>}, {pipeline_mode = #tpu.pipeline_mode<synchronous>, transform_indices = @transform_2, window_bounds = array<i64: 32, 128>}, {pipeline_mode = #tpu.pipeline_mode<synchronous>, transform_indices = @transform_3, window_bounds = array<i64: 1, 128>}, {pipeline_mode = #tpu.pipeline_mode<synchronous>, transform_indices = @transform_4, window_bounds = array<i64: 1, 128>}, {transform_indices = @transform_5, window_bounds = array<i64: 1, 8>}]} {
    %c0 = arith.constant 0 : index
    %c0_0 = arith.constant 0 : index
    %0 = vector.load %arg3[%c0, %c0_0] : memref<32x128xf32, #tpu.memory_space<vmem>>, vector<32x128xf32>
    %c0_1 = arith.constant 0 : index
    %c0_2 = arith.constant 0 : index
    %1 = vector.load %arg4[%c0_1, %c0_2] : memref<1x128xf32, #tpu.memory_space<vmem>>, vector<1x128xf32>
    %c0_3 = arith.constant 0 : index
    %c0_4 = arith.constant 0 : index
    %2 = vector.load %arg1[%c0_3, %c0_4] : memref<8x32xf32, #tpu.memory_space<vmem>>, vector<8x32xf32>
    %cst = arith.constant dense<0.000000e+00> : vector<8x128xf32>
    %3 = tpu.matmul %2, %0, %cst {dimension_numbers = #tpu.dot_dimension_numbers<[1], [0], [0], [1], [0, 0, 1, 1], [], []>} : vector<8x32xf32>, vector<32x128xf32>, vector<8x128xf32> -> vector<8x128xf32>
    %4 = vector.broadcast %1 : vector<1x128xf32> to vector<8x128xf32>
    %5 = arith.addf %3, %4 : vector<8x128xf32>
    %cst_5 = arith.constant 0.000000e+00 : f32
    %6 = vector.broadcast %cst_5 : f32 to vector<8x128xf32>
    %7 = arith.maximumf %5, %6 : vector<8x128xf32>
    %c0_6 = arith.constant 0 : index
    %c0_7 = arith.constant 0 : index
    %8 = vector.load %arg2[%c0_6, %c0_7] : memref<8x32xf32, #tpu.memory_space<vmem>>, vector<8x32xf32>
    %cst_8 = arith.constant dense<0.000000e+00> : vector<8x128xf32>
    %9 = tpu.matmul %8, %0, %cst_8 {dimension_numbers = #tpu.dot_dimension_numbers<[1], [0], [0], [1], [0, 0, 1, 1], [], []>} : vector<8x32xf32>, vector<32x128xf32>, vector<8x128xf32> -> vector<8x128xf32>
    %10 = vector.broadcast %1 : vector<1x128xf32> to vector<8x128xf32>
    %11 = arith.addf %9, %10 : vector<8x128xf32>
    %cst_9 = arith.constant 0.000000e+00 : f32
    %12 = vector.broadcast %cst_9 : f32 to vector<8x128xf32>
    %13 = arith.maximumf %11, %12 : vector<8x128xf32>
    %14 = arith.subf %13, %7 : vector<8x128xf32>
    %c0_10 = arith.constant 0 : index
    %c0_11 = arith.constant 0 : index
    %15 = vector.load %arg5[%c0_10, %c0_11] : memref<1x128xf32, #tpu.memory_space<vmem>>, vector<1x128xf32>
    %cst_12 = arith.constant dense<0.000000e+00> : vector<1x8xf32>
    %16 = tpu.matmul %15, %14, %cst_12 {dimension_numbers = #tpu.dot_dimension_numbers<[1], [1], [0], [0], [0, 0, 1, 0], [], []>} : vector<1x128xf32>, vector<8x128xf32>, vector<1x8xf32> -> vector<1x8xf32>
    %cst_13 = arith.constant 0.000000e+00 : f32
    %17 = vector.broadcast %cst_13 : f32 to vector<1x8xf32>
    %18 = arith.subf %17, %16 : vector<1x8xf32>
    %19 = math.exp %18 : vector<1x8xf32>
    %cst_14 = arith.constant 1.000000e+00 : f32
    %20 = vector.broadcast %cst_14 : f32 to vector<1x8xf32>
    %21 = arith.addf %20, %19 : vector<1x8xf32>
    %22 = tpu.reciprocal %21 {approx = true} : vector<1x8xf32> -> vector<1x8xf32>
    %c0_15 = arith.constant 0 : index
    %c0_16 = arith.constant 0 : index
    %23 = vector.load %arg6[%c0_15, %c0_16] : memref<1x8xf32, #tpu.memory_space<vmem>>, vector<1x8xf32>
    tpu.vector_store %arg6[%c0_15, %c0_16], %22 {strides = array<i32>} : memref<1x8xf32, #tpu.memory_space<vmem>>, vector<1x8xf32>,
    return
  }
  func.func @transform_0(%arg0: i32) -> (i32, i32) {
    %c0_i32 = arith.constant 0 : i32
    %c0_i32_0 = arith.constant 0 : i32
    return %arg0, %c0_i32 : i32, i32
  }
  func.func @transform_1(%arg0: i32) -> (i32, i32) {
    %c0_i32 = arith.constant 0 : i32
    %c0_i32_0 = arith.constant 0 : i32
    return %arg0, %c0_i32 : i32, i32
  }
  func.func @transform_2(%arg0: i32) -> (i32, i32) {
    %c0_i32 = arith.constant 0 : i32
    %c0_i32_0 = arith.constant 0 : i32
    %c0_i32_1 = arith.constant 0 : i32
    return %c0_i32, %c0_i32_0 : i32, i32
  }
  func.func @transform_3(%arg0: i32) -> (i32, i32) {
    %c0_i32 = arith.constant 0 : i32
    %c0_i32_0 = arith.constant 0 : i32
    %c0_i32_1 = arith.constant 0 : i32
    return %c0_i32, %c0_i32_0 : i32, i32
  }
  func.func @transform_4(%arg0: i32) -> (i32, i32) {
    %c0_i32 = arith.constant 0 : i32
    %c0_i32_0 = arith.constant 0 : i32
    %c0_i32_1 = arith.constant 0 : i32
    return %c0_i32, %c0_i32_0 : i32, i32
  }
  func.func @transform_5(%arg0: i32) -> (i32, i32) {
    %c0_i32 = arith.constant 0 : i32
    %c0_i32_0 = arith.constant 0 : i32
    return %c0_i32, %arg0 : i32, i32
  }
}

</mosaic_0001>

<llo_original>
// kernel: default_q.1
$region0: #{default_q.1}
  #allocation0 [shape = 'u32[]', space=smem, size = 0x4, offset = 0x4, fixed_abs, tag = 'smem constant byte address 0x4 - core index']
  #allocation1 [shape = 'u32[72,128]{1,0:T(1,128)}', space=vmem, size = 0x9000, scoped, tag = 'internal scratch']
  %s0 = inlined_call_operand.hbm [shape: f32[8,32], index: 0, kind: input, shape index: {}]
  %s1 = inlined_call_operand.hbm [shape: f32[8,32], index: 1, kind: input, shape index: {}]
  %s2 = inlined_call_operand.hbm [shape: f32[32,128], index: 2, kind: input, shape index: {}]
  %s3 = inlined_call_operand.vmem [shape: f32[1,128], index: 3, kind: input, shape index: {}]
  %s4 = inlined_call_operand.vmem [shape: f32[1,128], index: 4, kind: input, shape index: {}]
  %s5 = inlined_call_operand.hbm [shape: f32[1,8], index: 5, kind: output, shape index: {}]
  %s6 = sld [smem:[#allocation0]]
  $region42: #{default_q.1} parent=0
    _
  %s8 = ssub.s32 1, %s6
  %s9 = scalar_select 0, %s8, %s6
  $region1: #{default_q.1} parent=0
    #allocation2 [shape = 'u8[4096]{0}', space=vmem, size = 0x1000, scoped, tag = 'input window, operand 0, single buffered']
    #allocation3 [shape = 's32[1]{0}', space=sflag, size = 0x4, scoped, tag = 'scoped memory for default_q.1']
    #allocation4 [shape = 's32[1]{0}', space=sflag, size = 0x4, scoped, tag = 'scoped memory for default_q.1']
    #allocation5 [shape = 'u8[4096]{0}', space=vmem, size = 0x1000, scoped, tag = 'input window, operand 1, single buffered']
    #allocation6 [shape = 's32[1]{0}', space=sflag, size = 0x4, scoped, tag = 'scoped memory for default_q.1']
    #allocation7 [shape = 'u8[16384]{0}', space=vmem, size = 0x4000, scoped, tag = 'input window, operand 2, single buffered']
    #allocation8 [shape = 'u8[512]{0}', space=vmem, size = 0x400, scoped, tag = 'output window, operand 0, single buffered']
    %10 = vsyncpa [#allocation3], 0
    %11 = vsyncpa [#allocation6], 0
    %12 = vsyncpa [#allocation4], 0
    // Predicated region
    $region2: #{default_q.1} parent=1 // pred_check
      _
    $region3: #{default_q.1} parent=1 // pred_check_branch
      %14 = sbr.rel (0) target = $region5
    $region4: #{default_q.1} parent=1 // pred_region
      %16 = vsyncadd [#allocation3], 0
      %s18 = sshll.u32 %s0, 4
      %s19 = int_to_ptr.hbm [resolvable:$true] %s18
      %s20 = sshll.u32 [#allocation2], 4
      %s21 = int_to_ptr.vmem [resolvable:$true] %s20
      %23 = dma.hbm_to_vmem [thread:$0]  %s19, 128, %s21, [#allocation3]
    $region5: #{default_q.1} parent=1 // pred_fallthru
      _
    // Predicated region
    $region6: #{default_q.1} parent=1 // pred_check
      _
    $region7: #{default_q.1} parent=1 // pred_check_branch
      %25 = sbr.rel (0) target = $region9
    $region8: #{default_q.1} parent=1 // pred_region
      %27 = vsyncadd [#allocation6], 0
      %s29 = sshll.u32 %s1, 4
      %s30 = int_to_ptr.hbm [resolvable:$true] %s29
      %s31 = sshll.u32 [#allocation5], 4
      %s32 = int_to_ptr.vmem [resolvable:$true] %s31
      %34 = dma.hbm_to_vmem [thread:$0]  %s30, 128, %s32, [#allocation6]
    $region9: #{default_q.1} parent=1 // pred_fallthru
      _
    // Predicated region
    $region10: #{default_q.1} parent=1 // pred_check
      _
    $region11: #{default_q.1} parent=1 // pred_check_branch
      %36 = sbr.rel (0) target = $region13
    $region12: #{default_q.1} parent=1 // pred_region
      %38 = vsyncadd [#allocation6], 0
      %s39 = sshll.u32 %s2, 4
      %s40 = int_to_ptr.hbm [resolvable:$true] %s39
      %s41 = sshll.u32 [#allocation7], 4
      %s42 = int_to_ptr.vmem [resolvable:$true] %s41
      %47 = dma.hbm_to_vmem [thread:$0]  %s40, 512, %s42, [#allocation6], 128, 128, 8
    $region13: #{default_q.1} parent=1 // pred_fallthru
      _
    // Predicated region
    $region14: #{default_q.1} parent=1 // pred_check
      _
    $region15: #{default_q.1} parent=1 // pred_check_branch
      %49 = sbr.rel (0) target = $region17
    $region16: #{default_q.1} parent=1 // pred_region
      _
    $region17: #{default_q.1} parent=1 // pred_fallthru
      _
    // Predicated region
    $region18: #{default_q.1} parent=1 // pred_check
      _
    $region19: #{default_q.1} parent=1 // pred_check_branch
      %51 = sbr.rel (0) target = $region21
    $region20: #{default_q.1} parent=1 // pred_region
      _
    $region21: #{default_q.1} parent=1 // pred_fallthru
      _
    // Predicated region
    $region22: #{default_q.1} parent=1 // pred_check
      _
    $region23: #{default_q.1} parent=1 // pred_check_branch
      %53 = sbr.rel (0) target = $region25
    $region24: #{default_q.1} parent=1 // pred_region
      %55 = dma.done [#allocation3], 128
    $region25: #{default_q.1} parent=1 // pred_fallthru
      _
    // Predicated region
    $region26: #{default_q.1} parent=1 // pred_check
      _
    $region27: #{default_q.1} parent=1 // pred_check_branch
      %57 = sbr.rel (0) target = $region29
    $region28: #{default_q.1} parent=1 // pred_region
      %59 = dma.done [#allocation6], 128
    $region29: #{default_q.1} parent=1 // pred_fallthru
      _
    // Predicated region
    $region30: #{default_q.1} parent=1 // pred_check
      _
    $region31: #{default_q.1} parent=1 // pred_check_branch
      %61 = sbr.rel (0) target = $region33
    $region32: #{default_q.1} parent=1 // pred_region
      %63 = dma.done [#allocation6], 512
    $region33: #{default_q.1} parent=1 // pred_fallthru
      _
    %v64 = vld [vmem:[#allocation7] sm:$0xff]
    %v65 = vld [vmem:[#allocation7 + $0x8] sm:$0xff]
    %v66 = vld [vmem:[#allocation7 + $0x10] sm:$0xff]
    %v67 = vld [vmem:[#allocation7 + $0x18] sm:$0xff]
    %v68 = vld [vmem:[%s3] sm:$0x1]
    %v69 = vld [vmem:[#allocation2] sm:$0xff]
    %v71 = vperm.slane %v68, 0
    %vm73 = vcmask 261120
    %v75 = vsel %vm73, %v69, 0
    %77 = vmatpush.msra.mxu0 0.0
    %78 = vmatpush.msra.mxu0 0.0
    %79 = vmatpush.msra.mxu0 0.0
    %80 = vmatpush.msra.mxu0 0.0
    %81 = vmatpush.msra.mxu0 0.0
    %82 = vmatpush.msra.mxu0 0.0
    %83 = vmatpush.msra.mxu0 0.0
    %84 = vmatpush.msra.mxu0 0.0
    %85 = vmatpush.msra.mxu0 0.0
    %86 = vmatpush.msra.mxu0 0.0
    %87 = vmatpush.msra.mxu0 0.0
    %88 = vmatpush.msra.mxu0 0.0
    %89 = vmatpush.msra.mxu0 %v67
    %90 = vmatpush.msra.mxu0 %v66
    %91 = vmatpush.msra.mxu0 %v65
    %92 = vmatpush.msra.mxu0 %v64
    %93 = vmatmul.f32.gmra.mxu0 %v75
    %v94 = vpop.f32.mrf.mxu0
    %v95 = vadd.f32 %v71, %v94
    %96 = vdwg.mxu0
    %v97 = vmax.f32 %v95, 0.0
    %v98 = vld [vmem:[#allocation5] sm:$0xff]
    %v100 = vsel %vm73, %v98, 0
    %102 = vmatpush.msra.mxu0 0.0
    %103 = vmatpush.msra.mxu0 0.0
    %104 = vmatpush.msra.mxu0 0.0
    %105 = vmatpush.msra.mxu0 0.0
    %106 = vmatpush.msra.mxu0 0.0
    %107 = vmatpush.msra.mxu0 0.0
    %108 = vmatpush.msra.mxu0 0.0
    %109 = vmatpush.msra.mxu0 0.0
    %110 = vmatpush.msra.mxu0 0.0
    %111 = vmatpush.msra.mxu0 0.0
    %112 = vmatpush.msra.mxu0 0.0
    %113 = vmatpush.msra.mxu0 0.0
    %114 = vmatpush.msra.mxu0 %v67
    %115 = vmatpush.msra.mxu0 %v66
    %116 = vmatpush.msra.mxu0 %v65
    %117 = vmatpush.msra.mxu0 %v64
    %118 = vmatmul.f32.gmra.mxu0 %v100
    %v119 = vpop.f32.mrf.mxu0
    %v120 = vadd.f32 %v71, %v119
    %121 = vdwg.mxu0
    %v122 = vmax.f32 %v120, 0.0
    %v123 = vsub.f32 %v122, %v97
    %v124 = vld [vmem:[%s4] sm:$0x1]
    %125 = vmatpush.xpose.msra.mxu0 0.0
    %126 = vmatpush.xpose.msra.mxu0 0.0
    %127 = vmatpush.xpose.msra.mxu0 0.0
    %128 = vmatpush.xpose.msra.mxu0 0.0
    %129 = vmatpush.xpose.msra.mxu0 0.0
    %130 = vmatpush.xpose.msra.mxu0 0.0
    %131 = vmatpush.xpose.msra.mxu0 0.0
    %132 = vmatpush.xpose.msra.mxu0 0.0
    %133 = vmatpush.xpose.msra.mxu0 0.0
    %134 = vmatpush.xpose.msra.mxu0 0.0
    %135 = vmatpush.xpose.msra.mxu0 0.0
    %136 = vmatpush.xpose.msra.mxu0 0.0
    %137 = vmatpush.xpose.msra.mxu0 0.0
    %138 = vmatpush.xpose.msra.mxu0 0.0
    %139 = vmatpush.xpose.msra.mxu0 0.0
    %140 = vmatpush.xpose.msra.mxu0 %v123
    %141 = vmatmul.f32.gmra.mxu0 %v124
    %v142 = vpop.f32.mrf.mxu0
    %v143 = vadd.f32 0.0, %v142
    %144 = vdwg.mxu0
    %v145 = vsub.f32 0.0, %v143
    %v146 = vmul.f32 %v145, 1.442695
    %v147 = vpow.pop %v146
    %v148 = vadd.f32 %v147, 1.0
    %v149 = vrcp.pop %v148
    %vm150 = vcmask 57344
    %151 = vst.msk [vmem:[#allocation8] sm:$0x1] %vm150, %v149
    // Predicated region
    $region34: #{default_q.1} parent=1 // pred_check
      _
    $region35: #{default_q.1} parent=1 // pred_check_branch
      %153 = sbr.rel (0) target = $region37
    $region36: #{default_q.1} parent=1 // pred_region
      %155 = vsyncadd [#allocation4], 0
      %s157 = sshll.u32 [#allocation8], 4
      %s158 = int_to_ptr.vmem [resolvable:$true] %s157
      %s159 = sshll.u32 %s5, 4
      %s160 = int_to_ptr.hbm [resolvable:$true] %s159
      %162 = dma.vmem_to_hbm [thread:$0]  %s158, 16, %s160, [#allocation4]
    $region37: #{default_q.1} parent=1 // pred_fallthru
      _
    // Predicated region
    $region38: #{default_q.1} parent=1 // pred_check
      _
    $region39: #{default_q.1} parent=1 // pred_check_branch
      %164 = sbr.rel (0) target = $region41
    $region40: #{default_q.1} parent=1 // pred_region
      %166 = dma.done [#allocation4], 16
    $region41: #{default_q.1} parent=1 // pred_fallthru
      _
    %167 = vsyncpa [#allocation3], 1
    %168 = vsyncpa [#allocation6], 1
    %169 = vsyncpa [#allocation4], 1

</llo_original>
